<compile_context>
chip_gen: v5e
topology: v5e:2x2
jax: 0.10.0
libtpu: 0.0.40
codegen_flags: <defaults>
</compile_context>

<pallas_src>
import functools

import jax
import jax.numpy as jnp
import numpy as np
from jax import lax
from jax.experimental import pallas as pl
from jax.experimental.pallas import tpu as pltpu

SLOPE = 0.01                       # nn.LeakyReLU default negative_slope
_PREC = lax.Precision.HIGHEST      # conv dots only; selection dots use DEFAULT
_LANE = 128


def _rup(x, m=_LANE):
    return ((x + m - 1) // m) * m


def _lrelu(x):
    return jnp.where(x > 0, x, SLOPE * x)


# ----------------------------------------------------------------------------
# One-shot probe: determine pltpu.roll's direction on this hardware so the
# conv-tap shift sign is provably correct (wrong sign would mirror the conv).
# ----------------------------------------------------------------------------
def _roll_probe_kernel(x_ref, o_ref):
    o_ref[...] = pltpu.roll(x_ref[...], 1, axis=1)


@functools.lru_cache(maxsize=None)
def _roll_matches_jnp():
    x = jnp.tile(jnp.arange(_LANE, dtype=jnp.float32)[None, :], (8, 1))
    out = pl.pallas_call(
        _roll_probe_kernel,
        out_shape=jax.ShapeDtypeStruct((8, _LANE), jnp.float32))(x)
    # jnp.roll convention: result[i] == x[i - shift]  ->  out[0, 1] == 0
    return bool(jax.device_get(out)[0, 1] == 0.0)


# ----------------------------------------------------------------------------
# In-kernel helpers
# ----------------------------------------------------------------------------
def _conv3x3_flat(x, w, b, wp, *, roll_like_jnp):
    """3x3 conv (padding=1) on a zero-border, lane-padded flat activation.

    x : (Cin, T)  T = lane-padded (H+2)*(W+2); border + tail columns are 0
    w : (Cout, 9*Cin)  tap-major (dy, dx), channel-minor
    b : (Cout, 1)
    Returns (Cout, T).  Only interior columns are meaningful: border/tail
    columns hold garbage and must only ever be masked, selected-around, or
    cropped by the wrapper -- never consumed raw.
    """
    t = x.shape[1]
    taps = []
    for dy in range(3):
        for dx in range(3):
            s = (dy - 1) * wp + (dx - 1)          # want tap[:, q] = x[:, q + s]
            if s == 0:
                taps.append(x)
            else:
                amt = (-s) % t if roll_like_jnp else s % t
                taps.append(pltpu.roll(x, amt, axis=1))   # XLU, not vld/vst
    patches = jnp.concatenate(taps, axis=0)        # (9*Cin, T), sublane-aligned
    y = jnp.dot(w, patches, preferred_element_type=jnp.float32, precision=_PREC)
    return y + b


# ----------------------------------------------------------------------------
# Fused whole-network kernel (single invocation, no grid)
# ----------------------------------------------------------------------------
def _fused_kernel(c_ref, mask0_ref,
                  w1a_ref, b1a_ref, w1b_ref, b1b_ref,
                  w2a_ref, b2a_ref, w2b_ref, b2b_ref,
                  w3_ref, b3_ref, wlt_ref, blr_ref,
                  s01_ref, s12_ref, pool_ref,
                  out1_ref, out2_ref, out3_ref, out4_ref,
                  a0_scr,
                  *, N, Cin, H, W, wp0, wp1, roll_like_jnp):
    conv = functools.partial(_conv3x3_flat, roll_like_jnp=roll_like_jnp)

    # Hoist all weight / constant loads out of the per-image loop.
    mask0 = mask0_ref[...]
    w1a, b1a = w1a_ref[...], b1a_ref[...]
    w1b, b1b = w1b_ref[...], b1b_ref[...]
    w2a, b2a = w2a_ref[...], b2a_ref[...]
    w2b, b2b = w2b_ref[...], b2b_ref[...]
    w3, b3 = w3_ref[...], b3_ref[...]
    wlt, blr = wlt_ref[...], blr_ref[...]
    s01, s12, pool_row = s01_ref[...], s12_ref[...], pool_ref[...]

    # Zero the padded-flat input scratch once: borders, padded channels and the
    # lane tail stay zero; interiors are fully rewritten for every image.
    a0_scr[...] = jnp.zeros_like(a0_scr)

    rows4 = []
    for n in range(N):                             # static unroll over batch
        # ---- build zero-padded flat input of image n (interior rows only) ---
        for ci in range(Cin):
            img = c_ref[n, ci, :, :]                           # (H, W)
            for y in range(H):
                a0_scr[pl.ds(ci, 1),
                       pl.ds((y + 1) * wp0 + 1, W)] = img[y:y + 1, :]
        x0 = a0_scr[...]                                       # (Cpad, LP0)

        # level 0: Conv -> LeakyReLU -> Conv
        h = _lrelu(conv(x0, w1a, b1a, wp0)) * mask0
        y1 = conv(h, w1b, b1b, wp0)
        # NOTE: border / lane-tail columns of y1 hold conv garbage; they are
        # never consumed in-kernel (mask0 / selection) and the wrapper crops.
        out1_ref[n, :, :] = y1

        # level 1: LReLU -> Conv -> LReLU -> Conv(stride=2)
        a = _lrelu(y1) * mask0
        a = _lrelu(conv(a, w2a, b2a, wp0)) * mask0
        y2 = jnp.dot(conv(a, w2b, b2b, wp0), s01,
                     preferred_element_type=jnp.float32)       # (C1, LP1)
        out2_ref[n, :, :] = y2                                 # borders/tail 0

        # level 2: LReLU -> Conv(stride=2)
        y3 = jnp.dot(conv(_lrelu(y2), w3, b3, wp1), s12,
                     preferred_element_type=jnp.float32)       # (C2, LP2)
        out3_ref[n, :, :] = y3                                 # borders/tail 0

        # level 3: LReLU -> AvgPool(-> 1x1) -> Flatten -> Linear
        z = _lrelu(y3)
        pooled = lax.dot_general(pool_row, z, (((1,), (1,)), ((), ())),
                                 preferred_element_type=jnp.float32)  # (1, C2)
        rows4.append(jnp.dot(pooled, wlt,
                             preferred_element_type=jnp.float32) + blr)

    out4_ref[...] = jnp.concatenate(rows4, axis=0)             # (N, 512)


# ----------------------------------------------------------------------------
# One-time parameter / constant preparation (hoisted out of the forward)
# ----------------------------------------------------------------------------
def prepare_params(params, cin_pad=8):
    def conv_w(w):      # (Cout, Cin, 3, 3) -> (Cout, 9*Cin), tap-major
        co, ci = w.shape[0], w.shape[1]
        return jnp.transpose(w, (0, 2, 3, 1)).reshape(co, 9 * ci)

    w1a = params["w1a"]
    if w1a.shape[1] < cin_pad:                    # pad Cin 2 -> 8 (zero taps)
        w1a = jnp.pad(w1a, ((0, 0), (0, cin_pad - w1a.shape[1]), (0, 0), (0, 0)))
    prep = {"w1a": conv_w(w1a), "b1a": params["b1a"].reshape(-1, 1)}
    for k in ("1b", "2a", "2b", "3"):
        prep["w" + k] = conv_w(params["w" + k])
        prep["b" + k] = params["b" + k].reshape(-1, 1)
    prep["wlt"] = jnp.transpose(params["wl"])     # (C2, 512)
    prep["blr"] = params["bl"].reshape(1, -1)     # (1, 512)
    return prep


def build_constants(H, W, pool_k):
    """Per-image masks / selection constants (numpy, built once).  All lane
    lengths are padded to a multiple of 128; no batch block-diagonals."""
    assert H % 4 == 0 and W % 4 == 0
    wp0, wp1, wp2 = W + 2, W // 2 + 2, W // 4 + 2
    LP0 = _rup((H + 2) * wp0)
    LP1 = _rup((H // 2 + 2) * wp1)
    LP2 = _rup((H // 4 + 2) * wp2)

    mask0 = np.zeros((1, LP0), np.float32)
    for y in range(H):
        for x in range(W):
            mask0[0, (y + 1) * wp0 + (x + 1)] = 1.0

    def downsample(h, w, lin_pad, lout_pad):
        wpi, wpo = w + 2, w // 2 + 2
        s = np.zeros((lin_pad, lout_pad), np.float32)
        for oh in range(h // 2):
            for ow in range(w // 2):
                s[(1 + 2 * oh) * wpi + (1 + 2 * ow),
                  (1 + oh) * wpo + (1 + ow)] = 1.0
        return s

    s01 = downsample(H, W, LP0, LP1)
    s12 = downsample(H // 2, W // 2, LP1, LP2)

    h2, w2 = H // 4, W // 4
    hp_out = (h2 - pool_k) // pool_k + 1
    wp_out = (w2 - pool_k) // pool_k + 1
    # TODO(synk): pooled spatial > 1x1 (e.g. data_res=(28,28)) would need CHW
    # flatten handling in the linear; kernel is specialized to 1x1 pooling.
    assert hp_out == 1 and wp_out == 1, "kernel specialized to 1x1 pooled output"
    pool_row = np.zeros((1, LP2), np.float32)
    for di in range(pool_k):
        for dj in range(pool_k):
            pool_row[0, (1 + di) * wp2 + (1 + dj)] = 1.0 / (pool_k * pool_k)

    return {"mask0": jnp.asarray(mask0), "s01": jnp.asarray(s01),
            "s12": jnp.asarray(s12), "pool": jnp.asarray(pool_row)}


# ----------------------------------------------------------------------------
# Forward (single pallas_call + thin crop-only glue)
# ----------------------------------------------------------------------------
@functools.partial(jax.jit, static_argnames=("roll_like_jnp",))
def pallas_forward(c, prep, consts, *, roll_like_jnp):
    N, cin, H, W = c.shape
    cpad = max(8, ((cin + 7) // 8) * 8)
    C0 = prep["w1a"].shape[0]
    C1 = prep["w2a"].shape[0]
    C2 = prep["w3"].shape[0]
    D = prep["wlt"].shape[1]
    H1, W1 = H // 2, W // 2
    H2, W2 = H // 4, W // 4
    LP0 = _rup((H + 2) * (W + 2))
    LP1 = _rup((H1 + 2) * (W1 + 2))
    LP2 = _rup((H2 + 2) * (W2 + 2))
    assert prep["w1a"].shape[1] == 9 * cpad

    inputs = (c, consts["mask0"],
              prep["w1a"], prep["b1a"], prep["w1b"], prep["b1b"],
              prep["w2a"], prep["b2a"], prep["w2b"], prep["b2b"],
              prep["w3"], prep["b3"], prep["wlt"], prep["blr"],
              consts["s01"], consts["s12"], consts["pool"])

    def vspec(a):
        return pl.BlockSpec(a.shape, lambda: (0,) * a.ndim)

    out_shapes = (
        jax.ShapeDtypeStruct((N, C0, LP0), jnp.float32),
        jax.ShapeDtypeStruct((N, C1, LP1), jnp.float32),
        jax.ShapeDtypeStruct((N, C2, LP2), jnp.float32),
        jax.ShapeDtypeStruct((N, D), jnp.float32),
    )

    def ospec(shape):
        return pl.BlockSpec(shape, lambda: (0,) * len(shape))

    kern = functools.partial(_fused_kernel, N=N, Cin=cin, H=H, W=W,
                             wp0=W + 2, wp1=W1 + 2,
                             roll_like_jnp=roll_like_jnp)

    # TODO(synk): on v7x (2 TensorCores) add a batch grid axis with
    # dimension_semantics=("parallel",) so both cores run concurrently; kept
    # grid-less here (v5e/v6e are single-TC and N=2 is a toy size).
    o1, o2, o3, o4 = pl.pallas_call(
        kern,
        out_shape=out_shapes,
        in_specs=[vspec(a) for a in inputs],
        out_specs=tuple(ospec(s.shape) for s in out_shapes),
        scratch_shapes=[pltpu.VMEM((cpad, LP0), jnp.float32)],
        compiler_params=pltpu.CompilerParams(
            vmem_limit_bytes=32 * 1024 * 1024),
    )(*inputs)

    # Raw kernel outputs carry zero/garbage border + lane-tail columns by
    # design: always crop here (no transposes needed), never consume them raw.
    def crop(o, ch, h, w):
        L = (h + 2) * (w + 2)
        return o[:, :, :L].reshape(N, ch, h + 2, w + 2)[:, :, 1:h + 1, 1:w + 1]

    return (crop(o1, C0, H, W), crop(o2, C1, H1, W1),
            crop(o3, C2, H2, W2), o4)


# ----------------------------------------------------------------------------
# Pure-JAX reference (mirrors PyTorch NCHW semantics) for verification
# ----------------------------------------------------------------------------
def reference_forward(c_nchw, params, pool_k):
    def conv(x, w, b, stride):
        out = lax.conv_general_dilated(
            x, w, window_strides=(stride, stride), padding=((1, 1), (1, 1)),
            dimension_numbers=("NCHW", "OIHW", "NCHW"),
            precision=lax.Precision.HIGHEST)
        return out + b[None, :, None, None]

    def lrelu(x):
        return jnp.where(x > 0, x, SLOPE * x)

    p = params
    out1 = conv(lrelu(conv(c_nchw, p["w1a"], p["b1a"], 1)), p["w1b"], p["b1b"], 1)
    out2 = conv(lrelu(conv(lrelu(out1), p["w2a"], p["b2a"], 1)),
                p["w2b"], p["b2b"], 2)
    out3 = conv(lrelu(out2), p["w3"], p["b3"], 2)
    x = lrelu(out3)
    N, C, H, W = x.shape
    Hp, Wp = H // pool_k, W // pool_k
    x = x[:, :, :Hp * pool_k, :Wp * pool_k].reshape(N, C, Hp, pool_k, Wp, pool_k)
    x = x.mean(axis=(3, 5))
    feat = x.reshape(N, -1)  # CHW flatten order (torch .view)
    out4 = jnp.dot(feat, p["wl"].T, precision=lax.Precision.HIGHEST) + p["bl"]
    return out1, out2, out3, out4


# ----------------------------------------------------------------------------
# Main
# ----------------------------------------------------------------------------
if __name__ == "__main__":
    key = jax.random.PRNGKey(0)
    N = 2
    data_res = (16, 16)
    channels = (8, 16, 16)
    pool_k = 3 if data_res[0] < 64 else 4
    h_in = data_res[0] // (2 ** (len(channels) - 1))          # 16 / 4 = 4
    hp = (h_in - pool_k) // pool_k + 1                        # 1
    lin_shape = channels[-1] * hp * hp                        # 16

    keys = jax.random.split(key, 13)

    def conv_init(kw, kb, cin, cout):
        w = jax.random.normal(kw, (cout, cin, 3, 3), jnp.float32) / jnp.sqrt(9.0 * cin)
        b = 0.01 * jax.random.normal(kb, (cout,), jnp.float32)
        return w, b

    params = {}
    params["w1a"], params["b1a"] = conv_init(keys[0], keys[1], 2, channels[0])
    params["w1b"], params["b1b"] = conv_init(keys[2], keys[3], channels[0], channels[0])
    params["w2a"], params["b2a"] = conv_init(keys[4], keys[5], channels[0], channels[1])
    params["w2b"], params["b2b"] = conv_init(keys[6], keys[7], channels[1], channels[1])
    params["w3"],  params["b3"]  = conv_init(keys[8], keys[9], channels[1], channels[2])
    params["wl"] = jax.random.normal(keys[10], (512, lin_shape), jnp.float32) / jnp.sqrt(float(lin_shape))
    params["bl"] = 0.01 * jax.random.normal(keys[11], (512,), jnp.float32)

    c = jax.random.normal(keys[12], (N, 2) + data_res, jnp.float32)

    prep = prepare_params(params)
    consts = build_constants(data_res[0], data_res[1], pool_k)
    roll_like_jnp = _roll_matches_jnp()           # one-shot hardware probe

    outs = pallas_forward(c, prep, consts, roll_like_jnp=roll_like_jnp)
    outs = jax.block_until_ready(outs)

    refs = reference_forward(c, params, pool_k)
    expected_shapes = [(N, channels[0]) + data_res,
                       (N, channels[1], data_res[0] // 2, data_res[1] // 2),
                       (N, channels[2], data_res[0] // 4, data_res[1] // 4),
                       (N, 512)]
    for o, r, es in zip(outs, refs, expected_shapes):
        assert o.shape == es, (o.shape, es)
        assert jnp.allclose(o, r, rtol=2e-2, atol=2e-2), \
            float(jnp.max(jnp.abs(o - r)))

    print("KERNEL_OK")
</pallas_src>

<mosaic_0001>
module attributes {stable_mosaic.version = 11 : i64} {
  func.func @_roll_probe_kernel(%arg0: memref<8x128xf32, #tpu.memory_space<vmem>>, %arg1: memref<8x128xf32, #tpu.memory_space<vmem>>) attributes {dimension_semantics = [], scalar_prefetch = 0 : i64, scratch_operands = 0 : i64, tpu.core_type = #tpu.core_type<tc>} {
    %c0 = arith.constant 0 : index
    %c0_0 = arith.constant 0 : index
    %0 = vector.load %arg0[%c0, %c0_0] : memref<8x128xf32, #tpu.memory_space<vmem>>, vector<8x128xf32>
    %c1_i32 = arith.constant 1 : i32
    %1 = tpu.dynamic_rotate %0 by %c1_i32 dim 1 : vector<8x128xf32>, i32 -> vector<8x128xf32>
    %c0_1 = arith.constant 0 : index
    %c0_2 = arith.constant 0 : index
    %2 = vector.load %arg1[%c0_1, %c0_2] : memref<8x128xf32, #tpu.memory_space<vmem>>, vector<8x128xf32>
    tpu.vector_store %arg1[%c0_1, %c0_2], %1 {strides = array<i32>} : memref<8x128xf32, #tpu.memory_space<vmem>>, vector<8x128xf32>,
    return
  }
}

</mosaic_0001>

<llo_original>
// kernel: tpu_custom_call.1
$region0: #{tpu_custom_call.1}
  #allocation0 [shape = 'u32[]', space=smem, size = 0x4, offset = 0x4, fixed_abs, tag = 'smem constant byte address 0x4 - core index']
  #allocation1 [shape = 'u32[72,128]{1,0:T(1,128)}', space=vmem, size = 0x9000, scoped, tag = 'internal scratch']
  %s0 = inlined_call_operand.hbm [shape: f32[8,128], index: 0, kind: input, shape index: {}]
  %s1 = inlined_call_operand.hbm [shape: f32[8,128], index: 1, kind: output, shape index: {}]
  %s2 = sld [smem:[#allocation0]]
  $region18: #{tpu_custom_call.1} parent=0
    _
  %s4 = ssub.s32 1, %s2
  %s5 = scalar_select 0, %s4, %s2
  $region1: #{tpu_custom_call.1} parent=0
    #allocation2 [shape = 'u8[4096]{0}', space=vmem, size = 0x1000, scoped, tag = 'input window, operand 0, single buffered']
    #allocation3 [shape = 's32[1]{0}', space=sflag, size = 0x4, scoped, tag = 'scoped memory for tpu_custom_call.1']
    #allocation4 [shape = 's32[1]{0}', space=sflag, size = 0x4, scoped, tag = 'scoped memory for tpu_custom_call.1']
    #allocation5 [shape = 'u8[4096]{0}', space=vmem, size = 0x1000, scoped, tag = 'output window, operand 0, single buffered']
    %6 = vsyncpa [#allocation3], 0
    %7 = vsyncpa [#allocation4], 0
    // Predicated region
    $region2: #{tpu_custom_call.1} parent=1 // pred_check
      _
    $region3: #{tpu_custom_call.1} parent=1 // pred_check_branch
      %9 = sbr.rel (0) target = $region5
    $region4: #{tpu_custom_call.1} parent=1 // pred_region
      %11 = vsyncadd [#allocation3], 0
      %s13 = sshll.u32 %s0, 4
      %s14 = int_to_ptr.hbm [resolvable:$true] %s13
      %s15 = sshll.u32 [#allocation2], 4
      %s16 = int_to_ptr.vmem [resolvable:$true] %s15
      %18 = dma.hbm_to_vmem [thread:$0]  %s14, 128, %s16, [#allocation3]
    $region5: #{tpu_custom_call.1} parent=1 // pred_fallthru
      _
    // Predicated region
    $region6: #{tpu_custom_call.1} parent=1 // pred_check
      _
    $region7: #{tpu_custom_call.1} parent=1 // pred_check_branch
      %20 = sbr.rel (0) target = $region9
    $region8: #{tpu_custom_call.1} parent=1 // pred_region
      %22 = dma.done [#allocation3], 128
    $region9: #{tpu_custom_call.1} parent=1 // pred_fallthru
      _
    %v23 = vld [vmem:[#allocation2] sm:$0xff]
    %24 = vrot.lane.b32.xlu0 %v23, 1
    %v25 = vpop.permute.xlu0 %24
    %26 = vst [vmem:[#allocation5] sm:$0xff] %v25
    // Predicated region
    $region10: #{tpu_custom_call.1} parent=1 // pred_check
      _
    $region11: #{tpu_custom_call.1} parent=1 // pred_check_branch
      %28 = sbr.rel (0) target = $region13
    $region12: #{tpu_custom_call.1} parent=1 // pred_region
      %30 = vsyncadd [#allocation4], 0
      %s32 = sshll.u32 [#allocation5], 4
      %s33 = int_to_ptr.vmem [resolvable:$true] %s32
      %s34 = sshll.u32 %s1, 4
      %s35 = int_to_ptr.hbm [resolvable:$true] %s34
      %37 = dma.vmem_to_hbm [thread:$0]  %s33, 128, %s35, [#allocation4]
    $region13: #{tpu_custom_call.1} parent=1 // pred_fallthru
      _
    // Predicated region
    $region14: #{tpu_custom_call.1} parent=1 // pred_check
      _
    $region15: #{tpu_custom_call.1} parent=1 // pred_check_branch
      %39 = sbr.rel (0) target = $region17
    $region16: #{tpu_custom_call.1} parent=1 // pred_region
      %41 = dma.done [#allocation4], 128
    $region17: #{tpu_custom_call.1} parent=1 // pred_fallthru
      _
    %42 = vsyncpa [#allocation3], 1
    %43 = vsyncpa [#allocation4], 1

</llo_original>
